<compile_context>
chip_gen: v6e
topology: v6e:2x2x1
jax: 0.10.0
libtpu: 0.0.40
codegen_flags: <defaults>
</compile_context>

<pallas_src>
import jax
import jax.numpy as jnp
from jax.experimental import pallas as pl
from jax.experimental.pallas import tpu as pltpu


def _round_up(x, m):
    return ((x + m - 1) // m) * m


def _autoencoder_kernel(
    x_ref,                       # (TB, D) input block (native dtype, e.g. f32)
    w1, b1, w2, b2,              # encoder: Linear(D,32), Linear(32,16)
    w34, b34,                    # fused Linear(16,5) @ Linear(5,16)
    w5, b5, w6, b6,              # decoder: Linear(16,32), Linear(32,D)
    out_ref,                     # (TB, D) output block
):
    h = x_ref[...].astype(jnp.float32)

    def layer(h, w_ref, b_ref, relu):
        # MXU matmul with f32 accumulation; bias/ReLU on the VPU.
        y = jnp.dot(h, w_ref[...], preferred_element_type=jnp.float32) + b_ref[...]
        return jnp.maximum(y, 0.0) if relu else y

    # ---- encoder ----
    h = layer(h, w1, b1, relu=True)     # (TB, 32); Dropout(0.2) = identity (eval)
    h = layer(h, w2, b2, relu=True)     # (TB, 16)
    # Linear(16,5) -> Linear(5,16) have no activation between them; they are
    # pre-fused into one 16x16 matmul. The ReLU below is the decoder's ReLU.
    # ---- decoder ----
    h = layer(h, w34, b34, relu=True)   # (TB, 16); Dropout(0.2) = identity (eval)
    h = layer(h, w5, b5, relu=True)     # (TB, 32)
    y = layer(h, w6, b6, relu=False)    # (TB, D)
    out_ref[...] = y.astype(out_ref.dtype)
    # TODO(synk): training-mode Dropout would need pltpu.prng_seed /
    # pltpu.prng_random_bits masking with 1/(1-p) scaling; eval mode only here.


def prepare_kernel_params(params):
    """Fuse the activation-free Linear(16,5)->Linear(5,16) pair; keep f32."""
    f32 = lambda a: a.astype(jnp.float32)
    w34 = f32(params["w3"]) @ f32(params["w4"])                        # (16, 16)
    b34 = f32(params["b3"]) @ f32(params["w4"]) + f32(params["b4"])    # (1, 16)
    return (
        f32(params["w1"]), f32(params["b1"]),
        f32(params["w2"]), f32(params["b2"]),
        w34,               b34,
        f32(params["w5"]), f32(params["b5"]),
        f32(params["w6"]), f32(params["b6"]),
    )


def autoencoder_forward(x, kernel_params, *, block_rows=4096, target_tiles=8):
    """x: (B, D) float32. Returns (B, D) array of the same dtype."""
    B, D = x.shape

    # VMEM budget per tile row (f32): double-buffered x + out blocks plus
    # ~5 live lane-padded (>=128-lane) f32 intermediates. Cap actual usage to
    # ~40 MiB so it fits every generation (incl. v7x's 64 MiB physical VMEM).
    bytes_per_row = 2 * (D * 4) * 2 + 5 * 128 * 4
    tb_vmem_cap = max(8, ((40 << 20) // bytes_per_row) // 8 * 8)

    if B <= 8:
        TB = B                                    # full-extent block for tiny B
    else:
        # Big tiles to amortize per-step overhead, but keep >= target_tiles grid
        # steps when B is large enough (feeds both v7x TensorCores + pipelining).
        TB = min(block_rows, tb_vmem_cap, _round_up(pl.cdiv(B, target_tiles), 8))
        TB = max(TB, 8)
    num_tiles = pl.cdiv(B, TB)                    # partial last tile is OK

    xo_spec = pl.BlockSpec((TB, D), lambda i: (i, 0))
    # Weights/biases: full-extent blocks with a constant block index, so they
    # are DMA'd once and stay VMEM-resident across all grid steps.
    resident = lambda a: pl.BlockSpec(a.shape, lambda i: (0, 0))

    return pl.pallas_call(
        _autoencoder_kernel,
        out_shape=jax.ShapeDtypeStruct((B, D), x.dtype),
        grid=(num_tiles,),
        in_specs=[xo_spec] + [resident(a) for a in kernel_params],
        out_specs=xo_spec,
        compiler_params=pltpu.CompilerParams(
            dimension_semantics=("parallel",),
            vmem_limit_bytes=48 * 1024 * 1024,
        ),
    )(x, *kernel_params)


def init_params(key, input_dim):
    """PyTorch-style init U(-1/sqrt(fan_in), 1/sqrt(fan_in)).
    Weights stored transposed as (in, out); biases as (1, out)."""
    dims = [
        (input_dim, 32), (32, 16), (16, 5),        # encoder
        (5, 16), (16, 32), (32, input_dim),        # decoder
    ]
    params = {}
    for i, (fan_in, fan_out) in enumerate(dims, start=1):
        key, kw, kb = jax.random.split(key, 3)
        bound = 1.0 / (fan_in ** 0.5)
        params[f"w{i}"] = jax.random.uniform(
            kw, (fan_in, fan_out), jnp.float32, -bound, bound)
        params[f"b{i}"] = jax.random.uniform(
            kb, (1, fan_out), jnp.float32, -bound, bound)
    return params


def reference_forward_unfused(x, params):
    """Pure-JAX, f32, UN-fused 6-layer reference == PyTorch module in eval()."""
    h = x.astype(jnp.float32)
    lin = lambda h, w, b: h @ w.astype(jnp.float32) + b.astype(jnp.float32)
    h = jnp.maximum(lin(h, params["w1"], params["b1"]), 0.0)   # + Dropout (eval: id)
    h = jnp.maximum(lin(h, params["w2"], params["b2"]), 0.0)
    h = lin(h, params["w3"], params["b3"])                     # 5-dim latent, no act
    h = jnp.maximum(lin(h, params["w4"], params["b4"]), 0.0)   # + Dropout (eval: id)
    h = jnp.maximum(lin(h, params["w5"], params["b5"]), 0.0)
    return lin(h, params["w6"], params["b6"])


if __name__ == "__main__":
    key = jax.random.PRNGKey(0)
    batch, input_dim = 32, 64

    key, kx = jax.random.split(key)
    x = jax.random.normal(kx, (batch, input_dim), jnp.float32)
    params = init_params(key, input_dim)
    kernel_params = prepare_kernel_params(params)

    # With target_tiles=8 this small batch splits into TB=8 / grid=(4,), so the
    # test exercises the multi-step pipelined (and v7x 2-TC) path; production
    # callers with large B get tiles of up to 4096 rows automatically.
    out = autoencoder_forward(x, kernel_params)
    out = jax.block_until_ready(out)

    assert out.shape == (batch, input_dim)
    assert out.dtype == x.dtype

    # Validate against the TRUE un-fused 6-layer f32 network (not a
    # kernel-mirroring reference), per the correctness review.
    ref = reference_forward_unfused(x, params)
    assert jnp.allclose(out, ref, atol=2e-2, rtol=2e-2), \
        "mismatch vs un-fused f32 reference"

    print("KERNEL_OK")
</pallas_src>

<mosaic_0001>
module attributes {stable_mosaic.version = 11 : i64} {
  func.func @_autoencoder_kernel(%arg0: i32, %arg1: memref<8x64xf32, #tpu.memory_space<vmem>>, %arg2: memref<64x32xf32, #tpu.memory_space<vmem>>, %arg3: memref<1x32xf32, #tpu.memory_space<vmem>>, %arg4: memref<32x16xf32, #tpu.memory_space<vmem>>, %arg5: memref<1x16xf32, #tpu.memory_space<vmem>>, %arg6: memref<16x16xf32, #tpu.memory_space<vmem>>, %arg7: memref<1x16xf32, #tpu.memory_space<vmem>>, %arg8: memref<16x32xf32, #tpu.memory_space<vmem>>, %arg9: memref<1x32xf32, #tpu.memory_space<vmem>>, %arg10: memref<32x64xf32, #tpu.memory_space<vmem>>, %arg11: memref<1x64xf32, #tpu.memory_space<vmem>>, %arg12: memref<8x64xf32, #tpu.memory_space<vmem>>) attributes {dimension_semantics = [#tpu.dimension_semantics<parallel>], iteration_bounds = array<i64: 4>, scalar_prefetch = 0 : i64, scratch_operands = 0 : i64, tpu.core_type = #tpu.core_type<tc>, window_params = [{transform_indices = @transform_0, window_bounds = array<i64: 8, 64>}, {pipeline_mode = #tpu.pipeline_mode<synchronous>, transform_indices = @transform_1, window_bounds = array<i64: 64, 32>}, {pipeline_mode = #tpu.pipeline_mode<synchronous>, transform_indices = @transform_2, window_bounds = array<i64: 1, 32>}, {pipeline_mode = #tpu.pipeline_mode<synchronous>, transform_indices = @transform_3, window_bounds = array<i64: 32, 16>}, {pipeline_mode = #tpu.pipeline_mode<synchronous>, transform_indices = @transform_4, window_bounds = array<i64: 1, 16>}, {pipeline_mode = #tpu.pipeline_mode<synchronous>, transform_indices = @transform_5, window_bounds = array<i64: 16, 16>}, {pipeline_mode = #tpu.pipeline_mode<synchronous>, transform_indices = @transform_6, window_bounds = array<i64: 1, 16>}, {pipeline_mode = #tpu.pipeline_mode<synchronous>, transform_indices = @transform_7, window_bounds = array<i64: 16, 32>}, {pipeline_mode = #tpu.pipeline_mode<synchronous>, transform_indices = @transform_8, window_bounds = array<i64: 1, 32>}, {pipeline_mode = #tpu.pipeline_mode<synchronous>, transform_indices = @transform_9, window_bounds = array<i64: 32, 64>}, {pipeline_mode = #tpu.pipeline_mode<synchronous>, transform_indices = @transform_10, window_bounds = array<i64: 1, 64>}, {transform_indices = @transform_11, window_bounds = array<i64: 8, 64>}]} {
    %c0 = arith.constant 0 : index
    %c0_0 = arith.constant 0 : index
    %0 = vector.load %arg1[%c0, %c0_0] : memref<8x64xf32, #tpu.memory_space<vmem>>, vector<8x64xf32>
    %c0_1 = arith.constant 0 : index
    %c0_2 = arith.constant 0 : index
    %1 = vector.load %arg2[%c0_1, %c0_2] : memref<64x32xf32, #tpu.memory_space<vmem>>, vector<64x32xf32>
    %cst = arith.constant dense<0.000000e+00> : vector<8x32xf32>
    %2 = tpu.matmul %0, %1, %cst {dimension_numbers = #tpu.dot_dimension_numbers<[1], [0], [0], [1], [0, 0, 1, 1], [], []>} : vector<8x64xf32>, vector<64x32xf32>, vector<8x32xf32> -> vector<8x32xf32>
    %c0_3 = arith.constant 0 : index
    %c0_4 = arith.constant 0 : index
    %3 = vector.load %arg3[%c0_3, %c0_4] : memref<1x32xf32, #tpu.memory_space<vmem>>, vector<1x32xf32>
    %4 = vector.broadcast %3 : vector<1x32xf32> to vector<8x32xf32>
    %5 = arith.addf %2, %4 : vector<8x32xf32>
    %cst_5 = arith.constant 0.000000e+00 : f32
    %6 = vector.broadcast %cst_5 : f32 to vector<8x32xf32>
    %7 = arith.maximumf %5, %6 : vector<8x32xf32>
    %c0_6 = arith.constant 0 : index
    %c0_7 = arith.constant 0 : index
    %8 = vector.load %arg4[%c0_6, %c0_7] : memref<32x16xf32, #tpu.memory_space<vmem>>, vector<32x16xf32>
    %cst_8 = arith.constant dense<0.000000e+00> : vector<8x16xf32>
    %9 = tpu.matmul %7, %8, %cst_8 {dimension_numbers = #tpu.dot_dimension_numbers<[1], [0], [0], [1], [0, 0, 1, 1], [], []>} : vector<8x32xf32>, vector<32x16xf32>, vector<8x16xf32> -> vector<8x16xf32>
    %c0_9 = arith.constant 0 : index
    %c0_10 = arith.constant 0 : index
    %10 = vector.load %arg5[%c0_9, %c0_10] : memref<1x16xf32, #tpu.memory_space<vmem>>, vector<1x16xf32>
    %11 = vector.broadcast %10 : vector<1x16xf32> to vector<8x16xf32>
    %12 = arith.addf %9, %11 : vector<8x16xf32>
    %cst_11 = arith.constant 0.000000e+00 : f32
    %13 = vector.broadcast %cst_11 : f32 to vector<8x16xf32>
    %14 = arith.maximumf %12, %13 : vector<8x16xf32>
    %c0_12 = arith.constant 0 : index
    %c0_13 = arith.constant 0 : index
    %15 = vector.load %arg6[%c0_12, %c0_13] : memref<16x16xf32, #tpu.memory_space<vmem>>, vector<16x16xf32>
    %cst_14 = arith.constant dense<0.000000e+00> : vector<8x16xf32>
    %16 = tpu.matmul %14, %15, %cst_14 {dimension_numbers = #tpu.dot_dimension_numbers<[1], [0], [0], [1], [0, 0, 1, 1], [], []>} : vector<8x16xf32>, vector<16x16xf32>, vector<8x16xf32> -> vector<8x16xf32>
    %c0_15 = arith.constant 0 : index
    %c0_16 = arith.constant 0 : index
    %17 = vector.load %arg7[%c0_15, %c0_16] : memref<1x16xf32, #tpu.memory_space<vmem>>, vector<1x16xf32>
    %18 = vector.broadcast %17 : vector<1x16xf32> to vector<8x16xf32>
    %19 = arith.addf %16, %18 : vector<8x16xf32>
    %cst_17 = arith.constant 0.000000e+00 : f32
    %20 = vector.broadcast %cst_17 : f32 to vector<8x16xf32>
    %21 = arith.maximumf %19, %20 : vector<8x16xf32>
    %c0_18 = arith.constant 0 : index
    %c0_19 = arith.constant 0 : index
    %22 = vector.load %arg8[%c0_18, %c0_19] : memref<16x32xf32, #tpu.memory_space<vmem>>, vector<16x32xf32>
    %cst_20 = arith.constant dense<0.000000e+00> : vector<8x32xf32>
    %23 = tpu.matmul %21, %22, %cst_20 {dimension_numbers = #tpu.dot_dimension_numbers<[1], [0], [0], [1], [0, 0, 1, 1], [], []>} : vector<8x16xf32>, vector<16x32xf32>, vector<8x32xf32> -> vector<8x32xf32>
    %c0_21 = arith.constant 0 : index
    %c0_22 = arith.constant 0 : index
    %24 = vector.load %arg9[%c0_21, %c0_22] : memref<1x32xf32, #tpu.memory_space<vmem>>, vector<1x32xf32>
    %25 = vector.broadcast %24 : vector<1x32xf32> to vector<8x32xf32>
    %26 = arith.addf %23, %25 : vector<8x32xf32>
    %cst_23 = arith.constant 0.000000e+00 : f32
    %27 = vector.broadcast %cst_23 : f32 to vector<8x32xf32>
    %28 = arith.maximumf %26, %27 : vector<8x32xf32>
    %c0_24 = arith.constant 0 : index
    %c0_25 = arith.constant 0 : index
    %29 = vector.load %arg10[%c0_24, %c0_25] : memref<32x64xf32, #tpu.memory_space<vmem>>, vector<32x64xf32>
    %cst_26 = arith.constant dense<0.000000e+00> : vector<8x64xf32>
    %30 = tpu.matmul %28, %29, %cst_26 {dimension_numbers = #tpu.dot_dimension_numbers<[1], [0], [0], [1], [0, 0, 1, 1], [], []>} : vector<8x32xf32>, vector<32x64xf32>, vector<8x64xf32> -> vector<8x64xf32>
    %c0_27 = arith.constant 0 : index
    %c0_28 = arith.constant 0 : index
    %31 = vector.load %arg11[%c0_27, %c0_28] : memref<1x64xf32, #tpu.memory_space<vmem>>, vector<1x64xf32>
    %32 = vector.broadcast %31 : vector<1x64xf32> to vector<8x64xf32>
    %33 = arith.addf %30, %32 : vector<8x64xf32>
    %c0_29 = arith.constant 0 : index
    %c0_30 = arith.constant 0 : index
    %34 = vector.load %arg12[%c0_29, %c0_30] : memref<8x64xf32, #tpu.memory_space<vmem>>, vector<8x64xf32>
    tpu.vector_store %arg12[%c0_29, %c0_30], %33 {strides = array<i32>} : memref<8x64xf32, #tpu.memory_space<vmem>>, vector<8x64xf32>,
    return
  }
  func.func @transform_0(%arg0: i32) -> (i32, i32) {
    %c0_i32 = arith.constant 0 : i32
    %c0_i32_0 = arith.constant 0 : i32
    return %arg0, %c0_i32 : i32, i32
  }
  func.func @transform_1(%arg0: i32) -> (i32, i32) {
    %c0_i32 = arith.constant 0 : i32
    %c0_i32_0 = arith.constant 0 : i32
    %c0_i32_1 = arith.constant 0 : i32
    return %c0_i32, %c0_i32_0 : i32, i32
  }
  func.func @transform_2(%arg0: i32) -> (i32, i32) {
    %c0_i32 = arith.constant 0 : i32
    %c0_i32_0 = arith.constant 0 : i32
    %c0_i32_1 = arith.constant 0 : i32
    return %c0_i32, %c0_i32_0 : i32, i32
  }
  func.func @transform_3(%arg0: i32) -> (i32, i32) {
    %c0_i32 = arith.constant 0 : i32
    %c0_i32_0 = arith.constant 0 : i32
    %c0_i32_1 = arith.constant 0 : i32
    return %c0_i32, %c0_i32_0 : i32, i32
  }
  func.func @transform_4(%arg0: i32) -> (i32, i32) {
    %c0_i32 = arith.constant 0 : i32
    %c0_i32_0 = arith.constant 0 : i32
    %c0_i32_1 = arith.constant 0 : i32
    return %c0_i32, %c0_i32_0 : i32, i32
  }
  func.func @transform_5(%arg0: i32) -> (i32, i32) {
    %c0_i32 = arith.constant 0 : i32
    %c0_i32_0 = arith.constant 0 : i32
    %c0_i32_1 = arith.constant 0 : i32
    return %c0_i32, %c0_i32_0 : i32, i32
  }
  func.func @transform_6(%arg0: i32) -> (i32, i32) {
    %c0_i32 = arith.constant 0 : i32
    %c0_i32_0 = arith.constant 0 : i32
    %c0_i32_1 = arith.constant 0 : i32
    return %c0_i32, %c0_i32_0 : i32, i32
  }
  func.func @transform_7(%arg0: i32) -> (i32, i32) {
    %c0_i32 = arith.constant 0 : i32
    %c0_i32_0 = arith.constant 0 : i32
    %c0_i32_1 = arith.constant 0 : i32
    return %c0_i32, %c0_i32_0 : i32, i32
  }
  func.func @transform_8(%arg0: i32) -> (i32, i32) {
    %c0_i32 = arith.constant 0 : i32
    %c0_i32_0 = arith.constant 0 : i32
    %c0_i32_1 = arith.constant 0 : i32
    return %c0_i32, %c0_i32_0 : i32, i32
  }
  func.func @transform_9(%arg0: i32) -> (i32, i32) {
    %c0_i32 = arith.constant 0 : i32
    %c0_i32_0 = arith.constant 0 : i32
    %c0_i32_1 = arith.constant 0 : i32
    return %c0_i32, %c0_i32_0 : i32, i32
  }
  func.func @transform_10(%arg0: i32) -> (i32, i32) {
    %c0_i32 = arith.constant 0 : i32
    %c0_i32_0 = arith.constant 0 : i32
    %c0_i32_1 = arith.constant 0 : i32
    return %c0_i32, %c0_i32_0 : i32, i32
  }
  func.func @transform_11(%arg0: i32) -> (i32, i32) {
    %c0_i32 = arith.constant 0 : i32
    %c0_i32_0 = arith.constant 0 : i32
    return %arg0, %c0_i32 : i32, i32
  }
}

</mosaic_0001>

<llo_original>
// kernel: tpu_custom_call.1
$region0: #{tpu_custom_call.1}
  #allocation0 [shape = 'u32[]', space=smem, size = 0x4, offset = 0x4, fixed_abs, tag = 'smem constant byte address 0x4 - core index']
  #allocation1 [shape = 'u32[144,128]{1,0:T(1,128)}', space=vmem, size = 0x12000, scoped, tag = 'internal scratch']
  %s0 = inlined_call_operand.vmem [shape: f32[32,64], index: 0, kind: input, shape index: {}]
  %s1 = inlined_call_operand.vmem [shape: f32[64,32], index: 1, kind: input, shape index: {}]
  %s2 = inlined_call_operand.vmem [shape: f32[1,32], index: 2, kind: input, shape index: {}]
  %s3 = inlined_call_operand.vmem [shape: f32[32,16], index: 3, kind: input, shape index: {}]
  %s4 = inlined_call_operand.vmem [shape: f32[1,16], index: 4, kind: input, shape index: {}]
  %s5 = inlined_call_operand.vmem [shape: f32[16,16], index: 5, kind: input, shape index: {}]
  %s6 = inlined_call_operand.vmem [shape: f32[1,16], index: 6, kind: input, shape index: {}]
  %s7 = inlined_call_operand.vmem [shape: f32[16,32], index: 7, kind: input, shape index: {}]
  %s8 = inlined_call_operand.vmem [shape: f32[1,32], index: 8, kind: input, shape index: {}]
  %s9 = inlined_call_operand.vmem [shape: f32[32,64], index: 9, kind: input, shape index: {}]
  %s10 = inlined_call_operand.vmem [shape: f32[1,64], index: 10, kind: input, shape index: {}]
  %s11 = inlined_call_operand.hbm [shape: f32[32,64], index: 11, kind: output, shape index: {}]
  %s12 = sld [smem:[#allocation0]]
  $region77: #{tpu_custom_call.1} parent=0
    _
  %s14 = ssub.s32 1, %s12
  %s15 = scalar_select 0, %s14, %s12
  $region1: #{tpu_custom_call.1} parent=0
    #allocation2 [shape = 'u8[8192]{0}', space=vmem, size = 0x2000, scoped, tag = 'output window, operand 0']
    #allocation3 [shape = 's32[2]{0}', space=sflag, size = 0x8, scoped, tag = 'scoped memory for tpu_custom_call.1']
    %16 = vsyncpa [#allocation3], 0
    %s17 = scalar_lea.sflag [#allocation3], 1
    %18 = vsyncpa %s17, 0
    loop: start=0, step=1, limit=6
    $region2: #{tpu_custom_call.1} parent=1 // loop_pre_header
      _
    $region3: #{tpu_custom_call.1} parent=1 // loop_header
      %s20 = sphi 0, %s24
      %p21 = scmp.ge.s32.totalorder %s20, 6
      %s30 = sphi 0, %s32
      %s33 = sphi 0, %s30
      %s34 = sphi 0, %s33
      %s50 = sphi 0, %s34
      %s54 = sphi 0, %s54
      %s56 = sphi 0, %s54
      %s57 = sphi 0, %s56
      %s71 = sphi 0, %s57
      %s75 = sphi 0, %s75
      %s77 = sphi 0, %s75
      %s78 = sphi 0, %s77
      %s92 = sphi 0, %s78
      %s96 = sphi 0, %s96
      %s98 = sphi 0, %s96
      %s99 = sphi 0, %s98
      %s113 = sphi 0, %s99
      %s117 = sphi 0, %s117
      %s119 = sphi 0, %s117
      %s120 = sphi 0, %s119
      %s134 = sphi 0, %s120
      %s138 = sphi 0, %s138
      %s140 = sphi 0, %s138
      %s141 = sphi 0, %s140
      %s155 = sphi 0, %s141
      %s159 = sphi 0, %s159
      %s161 = sphi 0, %s159
      %s162 = sphi 0, %s161
      %s176 = sphi 0, %s162
      %s180 = sphi 0, %s180
      %s182 = sphi 0, %s180
      %s183 = sphi 0, %s182
      %s197 = sphi 0, %s183
      %s201 = sphi 0, %s201
      %s203 = sphi 0, %s201
      %s204 = sphi 0, %s203
      %s218 = sphi 0, %s204
      %s222 = sphi 0, %s222
      %s224 = sphi 0, %s222
      %s225 = sphi 0, %s224
      %s239 = sphi 0, %s225
      %s243 = sphi 0, %s243
      %s245 = sphi 0, %s243
      %s246 = sphi 0, %s245
      %s260 = sphi 0, %s246
      %s266 = sphi 0, %s268
      %s269 = sphi 0, %s266
      %s270 = sphi 0, %s269
      %s286 = sphi 0, %s270
    $region4: #{tpu_custom_call.1} parent=1 // loop_header_branch
      %23 = sbr.rel (%p21) target = $region8
    $region5: #{tpu_custom_call.1} parent=1 // loop_body
      %s25 = ssub.s32 %s20, 1
      %s26 = ssub.s32 %s20, 2
      %s27 = sadd.s32 %s20, 1
      %s28 = ssub.s32 %s20, %s27
      %p29 = scmp.eq.s32.totalorder %s28, 0
      %s31 = sadd.s32 %s30, 1
      %s32 = scalar_select %p29, %s30, %s31
      %p35 = pneg %p29
      %p36 = scmp.eq.s32.totalorder %s20, 3
      %p37 = por %p35, %p36
      %p38 = scmp.ne.s32.totalorder %s30, %s33
      %p39 = scmp.eq.s32.totalorder %s20, 0
      %p40 = por %p38, %p39
      %p41 = scmp.ne.s32.totalorder %s30, %s33
      %p42 = scmp.eq.s32.totalorder %s25, 3
      %p43 = por %p41, %p42
      %p44 = scmp.ne.s32.totalorder %s33, %s34
      %p45 = scmp.eq.s32.totalorder %s25, 0
      %p46 = por %p44, %p45
      %p47 = scmp.ne.s32.totalorder %s33, %s34
      %p48 = scmp.eq.s32.totalorder %s26, 3
      %p49 = por %p47, %p48
      %p51 = scmp.ne.s32.totalorder %s34, %s50
      %p52 = scmp.eq.s32.totalorder %s26, 0
      %p53 = por %p51, %p52
      %s55 = sadd.s32 %s54, 1
      %p58 = scmp.eq.s32.totalorder %s20, 3
      %p59 = scmp.ne.s32.totalorder %s54, %s56
      %p60 = scmp.eq.s32.totalorder %s20, 0
      %p61 = por %p59, %p60
      %p62 = scmp.ne.s32.totalorder %s54, %s56
      %p63 = scmp.eq.s32.totalorder %s25, 3
      %p64 = por %p62, %p63
      %p65 = scmp.ne.s32.totalorder %s56, %s57
      %p66 = scmp.eq.s32.totalorder %s25, 0
      %p67 = por %p65, %p66
      %p68 = scmp.ne.s32.totalorder %s56, %s57
      %p69 = scmp.eq.s32.totalorder %s26, 3
      %p70 = por %p68, %p69
      %p72 = scmp.ne.s32.totalorder %s57, %s71
      %p73 = scmp.eq.s32.totalorder %s26, 0
      %p74 = por %p72, %p73
      %s76 = sadd.s32 %s75, 1
      %p79 = scmp.eq.s32.totalorder %s20, 3
      %p80 = scmp.ne.s32.totalorder %s75, %s77
      %p81 = scmp.eq.s32.totalorder %s20, 0
      %p82 = por %p80, %p81
      %p83 = scmp.ne.s32.totalorder %s75, %s77
      %p84 = scmp.eq.s32.totalorder %s25, 3
      %p85 = por %p83, %p84
      %p86 = scmp.ne.s32.totalorder %s77, %s78
      %p87 = scmp.eq.s32.totalorder %s25, 0
      %p88 = por %p86, %p87
      %p89 = scmp.ne.s32.totalorder %s77, %s78
      %p90 = scmp.eq.s32.totalorder %s26, 3
      %p91 = por %p89, %p90
      %p93 = scmp.ne.s32.totalorder %s78, %s92
      %p94 = scmp.eq.s32.totalorder %s26, 0
      %p95 = por %p93, %p94
      %s97 = sadd.s32 %s96, 1
      %p100 = scmp.eq.s32.totalorder %s20, 3
      %p101 = scmp.ne.s32.totalorder %s96, %s98
      %p102 = scmp.eq.s32.totalorder %s20, 0
      %p103 = por %p101, %p102
      %p104 = scmp.ne.s32.totalorder %s96, %s98
      %p105 = scmp.eq.s32.totalorder %s25, 3
      %p106 = por %p104, %p105
      %p107 = scmp.ne.s32.totalorder %s98, %s99
      %p108 = scmp.eq.s32.totalorder %s25, 0
      %p109 = por %p107, %p108
      %p110 = scmp.ne.s32.totalorder %s98, %s99
      %p111 = scmp.eq.s32.totalorder %s26, 3
      %p112 = por %p110, %p111
      %p114 = scmp.ne.s32.totalorder %s99, %s113
      %p115 = scmp.eq.s32.totalorder %s26, 0
      %p116 = por %p114, %p115
      %s118 = sadd.s32 %s117, 1
      %p121 = scmp.eq.s32.totalorder %s20, 3
      %p122 = scmp.ne.s32.totalorder %s117, %s119
      %p123 = scmp.eq.s32.totalorder %s20, 0
      %p124 = por %p122, %p123
      %p125 = scmp.ne.s32.totalorder %s117, %s119
      %p126 = scmp.eq.s32.totalorder %s25, 3
      %p127 = por %p125, %p126
      %p128 = scmp.ne.s32.totalorder %s119, %s120
      %p129 = scmp.eq.s32.totalorder %s25, 0
      %p130 = por %p128, %p129
      %p131 = scmp.ne.s32.totalorder %s119, %s120
      %p132 = scmp.eq.s32.totalorder %s26, 3
      %p133 = por %p131, %p132
      %p135 = scmp.ne.s32.totalorder %s120, %s134
      %p136 = scmp.eq.s32.totalorder %s26, 0
      %p137 = por %p135, %p136
      %s139 = sadd.s32 %s138, 1
      %p142 = scmp.eq.s32.totalorder %s20, 3
      %p143 = scmp.ne.s32.totalorder %s138, %s140
      %p144 = scmp.eq.s32.totalorder %s20, 0
      %p145 = por %p143, %p144
      %p146 = scmp.ne.s32.totalorder %s138, %s140
      %p147 = scmp.eq.s32.totalorder %s25, 3
      %p148 = por %p146, %p147
      %p149 = scmp.ne.s32.totalorder %s140, %s141
      %p150 = scmp.eq.s32.totalorder %s25, 0
      %p151 = por %p149, %p150
      %p152 = scmp.ne.s32.totalorder %s140, %s141
      %p153 = scmp.eq.s32.totalorder %s26, 3
      %p154 = por %p152, %p153
      %p156 = scmp.ne.s32.totalorder %s141, %s155
      %p157 = scmp.eq.s32.totalorder %s26, 0
      %p158 = por %p156, %p157
      %s160 = sadd.s32 %s159, 1
      %p163 = scmp.eq.s32.totalorder %s20, 3
      %p164 = scmp.ne.s32.totalorder %s159, %s161
      %p165 = scmp.eq.s32.totalorder %s20, 0
      %p166 = por %p164, %p165
      %p167 = scmp.ne.s32.totalorder %s159, %s161
      %p168 = scmp.eq.s32.totalorder %s25, 3
      %p169 = por %p167, %p168
      %p170 = scmp.ne.s32.totalorder %s161, %s162
      %p171 = scmp.eq.s32.totalorder %s25, 0
      %p172 = por %p170, %p171
      %p173 = scmp.ne.s32.totalorder %s161, %s162
      %p174 = scmp.eq.s32.totalorder %s26, 3
      %p175 = por %p173, %p174
      %p177 = scmp.ne.s32.totalorder %s162, %s176
      %p178 = scmp.eq.s32.totalorder %s26, 0
      %p179 = por %p177, %p178
      %s181 = sadd.s32 %s180, 1
      %p184 = scmp.eq.s32.totalorder %s20, 3
      %p185 = scmp.ne.s32.totalorder %s180, %s182
      %p186 = scmp.eq.s32.totalorder %s20, 0
      %p187 = por %p185, %p186
      %p188 = scmp.ne.s32.totalorder %s180, %s182
      %p189 = scmp.eq.s32.totalorder %s25, 3
      %p190 = por %p188, %p189
      %p191 = scmp.ne.s32.totalorder %s182, %s183
      %p192 = scmp.eq.s32.totalorder %s25, 0
      %p193 = por %p191, %p192
      %p194 = scmp.ne.s32.totalorder %s182, %s183
      %p195 = scmp.eq.s32.totalorder %s26, 3
      %p196 = por %p194, %p195
      %p198 = scmp.ne.s32.totalorder %s183, %s197
      %p199 = scmp.eq.s32.totalorder %s26, 0
      %p200 = por %p198, %p199
      %s202 = sadd.s32 %s201, 1
      %p205 = scmp.eq.s32.totalorder %s20, 3
      %p206 = scmp.ne.s32.totalorder %s201, %s203
      %p207 = scmp.eq.s32.totalorder %s20, 0
      %p208 = por %p206, %p207
      %p209 = scmp.ne.s32.totalorder %s201, %s203
      %p210 = scmp.eq.s32.totalorder %s25, 3
      %p211 = por %p209, %p210
      %p212 = scmp.ne.s32.totalorder %s203, %s204
      %p213 = scmp.eq.s32.totalorder %s25, 0
      %p214 = por %p212, %p213
      %p215 = scmp.ne.s32.totalorder %s203, %s204
      %p216 = scmp.eq.s32.totalorder %s26, 3
      %p217 = por %p215, %p216
      %p219 = scmp.ne.s32.totalorder %s204, %s218
      %p220 = scmp.eq.s32.totalorder %s26, 0
      %p221 = por %p219, %p220
      %s223 = sadd.s32 %s222, 1
      %p226 = scmp.eq.s32.totalorder %s20, 3
      %p227 = scmp.ne.s32.totalorder %s222, %s224
      %p228 = scmp.eq.s32.totalorder %s20, 0
      %p229 = por %p227, %p228
      %p230 = scmp.ne.s32.totalorder %s222, %s224
      %p231 = scmp.eq.s32.totalorder %s25, 3
      %p232 = por %p230, %p231
      %p233 = scmp.ne.s32.totalorder %s224, %s225
      %p234 = scmp.eq.s32.totalorder %s25, 0
      %p235 = por %p233, %p234
      %p236 = scmp.ne.s32.totalorder %s224, %s225
      %p237 = scmp.eq.s32.totalorder %s26, 3
      %p238 = por %p236, %p237
      %p240 = scmp.ne.s32.totalorder %s225, %s239
      %p241 = scmp.eq.s32.totalorder %s26, 0
      %p242 = por %p240, %p241
      %s244 = sadd.s32 %s243, 1
      %p247 = scmp.eq.s32.totalorder %s20, 3
      %p248 = scmp.ne.s32.totalorder %s243, %s245
      %p249 = scmp.eq.s32.totalorder %s20, 0
      %p250 = por %p248, %p249
      %p251 = scmp.ne.s32.totalorder %s243, %s245
      %p252 = scmp.eq.s32.totalorder %s25, 3
      %p253 = por %p251, %p252
      %p254 = scmp.ne.s32.totalorder %s245, %s246
      %p255 = scmp.eq.s32.totalorder %s25, 0
      %p256 = por %p254, %p255
      %p257 = scmp.ne.s32.totalorder %s245, %s246
      %p258 = scmp.eq.s32.totalorder %s26, 3
      %p259 = por %p257, %p258
      %p261 = scmp.ne.s32.totalorder %s246, %s260
      %p262 = scmp.eq.s32.totalorder %s26, 0
      %p263 = por %p261, %p262
      %s264 = ssub.s32 %s20, %s27
      %p265 = scmp.eq.s32.totalorder %s264, 0
      %s267 = sadd.s32 %s266, 1
      %s268 = scalar_select %p265, %s266, %s267
      %p271 = pneg %p265
      %p272 = scmp.eq.s32.totalorder %s20, 3
      %p273 = por %p271, %p272
      %p274 = scmp.ne.s32.totalorder %s266, %s269
      %p275 = scmp.eq.s32.totalorder %s20, 0
      %p276 = por %p274, %p275
      %p277 = scmp.ne.s32.totalorder %s266, %s269
      %p278 = scmp.eq.s32.totalorder %s25, 3
      %p279 = por %p277, %p278
      %p280 = scmp.ne.s32.totalorder %s269, %s270
      %p281 = scmp.eq.s32.totalorder %s25, 0
      %p282 = por %p280, %p281
      %p283 = scmp.ne.s32.totalorder %s269, %s270
      %p284 = scmp.eq.s32.totalorder %s26, 3
      %p285 = por %p283, %p284
      %p287 = scmp.ne.s32.totalorder %s270, %s286
      %p288 = scmp.eq.s32.totalorder %s26, 0
      %p289 = por %p287, %p288
      %p290 = scmp.le.s32.totalorder 1, %s20
      %p291 = scmp.lt.s32.totalorder %s20, 5
      %p292 = pnand %p290, %p291
      %p293 = pneg %p292
      // Predicated region
      $region9: #{tpu_custom_call.1} parent=5 // pred_check
        _
      $region10: #{tpu_custom_call.1} parent=5 // pred_check_branch
        %295 = sbr.rel (%p292) target = $region12
      $region11: #{tpu_custom_call.1} parent=5 // pred_region
        %s296 = ssub.s32 %s20, 1
        // Predicated region
        $region13: #{tpu_custom_call.1} parent=11 // pred_check
          %p297 = pneg %p67
        $region14: #{tpu_custom_call.1} parent=11 // pred_check_branch
          %299 = sbr.rel (%p297) target = $region16
        $region15: #{tpu_custom_call.1} parent=11 // pred_region
          _
        $region16: #{tpu_custom_call.1} parent=11 // pred_fallthru
          _
        // Predicated region
        $region17: #{tpu_custom_call.1} parent=11 // pred_check
          %p300 = pneg %p88
        $region18: #{tpu_custom_call.1} parent=11 // pred_check_branch
          %302 = sbr.rel (%p300) target = $region20
        $region19: #{tpu_custom_call.1} parent=11 // pred_region
          _
        $region20: #{tpu_custom_call.1} parent=11 // pred_fallthru
          _
        // Predicated region
        $region21: #{tpu_custom_call.1} parent=11 // pred_check
          %p303 = pneg %p109
        $region22: #{tpu_custom_call.1} parent=11 // pred_check_branch
          %305 = sbr.rel (%p303) target = $region24
        $region23: #{tpu_custom_call.1} parent=11 // pred_region
          _
        $region24: #{tpu_custom_call.1} parent=11 // pred_fallthru
          _
        // Predicated region
        $region25: #{tpu_custom_call.1} parent=11 // pred_check
          %p306 = pneg %p130
        $region26: #{tpu_custom_call.1} parent=11 // pred_check_branch
          %308 = sbr.rel (%p306) target = $region28
        $region27: #{tpu_custom_call.1} parent=11 // pred_region
          _
        $region28: #{tpu_custom_call.1} parent=11 // pred_fallthru
          _
        // Predicated region
        $region29: #{tpu_custom_call.1} parent=11 // pred_check
          %p309 = pneg %p151
        $region30: #{tpu_custom_call.1} parent=11 // pred_check_branch
          %311 = sbr.rel (%p309) target = $region32
        $region31: #{tpu_custom_call.1} parent=11 // pred_region
          _
        $region32: #{tpu_custom_call.1} parent=11 // pred_fallthru
          _
        // Predicated region
        $region33: #{tpu_custom_call.1} parent=11 // pred_check
          %p312 = pneg %p172
        $region34: #{tpu_custom_call.1} parent=11 // pred_check_branch
          %314 = sbr.rel (%p312) target = $region36
        $region35: #{tpu_custom_call.1} parent=11 // pred_region
          _
        $region36: #{tpu_custom_call.1} parent=11 // pred_fallthru
          _
        // Predicated region
        $region37: #{tpu_custom_call.1} parent=11 // pred_check
          %p315 = pneg %p193
        $region38: #{tpu_custom_call.1} parent=11 // pred_check_branch
          %317 = sbr.rel (%p315) target = $region40
        $region39: #{tpu_custom_call.1} parent=11 // pred_region
          _
        $region40: #{tpu_custom_call.1} parent=11 // pred_fallthru
          _
        // Predicated region
        $region41: #{tpu_custom_call.1} parent=11 // pred_check
          %p318 = pneg %p214
        $region42: #{tpu_custom_call.1} parent=11 // pred_check_branch
          %320 = sbr.rel (%p318) target = $region44
        $region43: #{tpu_custom_call.1} parent=11 // pred_region
          _
        $region44: #{tpu_custom_call.1} parent=11 // pred_fallthru
          _
        // Predicated region
        $region45: #{tpu_custom_call.1} parent=11 // pred_check
          %p321 = pneg %p235
        $region46: #{tpu_custom_call.1} parent=11 // pred_check_branch
          %323 = sbr.rel (%p321) target = $region48
        $region47: #{tpu_custom_call.1} parent=11 // pred_region
          _
        $region48: #{tpu_custom_call.1} parent=11 // pred_fallthru
          _
        // Predicated region
        $region49: #{tpu_custom_call.1} parent=11 // pred_check
          %p324 = pneg %p256
        $region50: #{tpu_custom_call.1} parent=11 // pred_check_branch
          %326 = sbr.rel (%p324) target = $region52
        $region51: #{tpu_custom_call.1} parent=11 // pred_region
          _
        $region52: #{tpu_custom_call.1} parent=11 // pred_fallthru
          _
      $region12: #{tpu_custom_call.1} parent=5 // pred_fallthru
        _
      %p327 = scmp.lt.s32.totalorder %s20, 4
      // Predicated region
      $region53: #{tpu_custom_call.1} parent=5 // pred_check
        %p328 = pneg %p327
      $region54: #{tpu_custom_call.1} parent=5 // pred_check_branch
        %330 = sbr.rel (%p328) target = $region56
      $region55: #{tpu_custom_call.1} parent=5 // pred_region
        // Predicated region
        $region57: #{tpu_custom_call.1} parent=55 // pred_check
          %p331 = pneg %p40
        $region58: #{tpu_custom_call.1} parent=55 // pred_check_branch
          %333 = sbr.rel (%p331) target = $region60
        $region59: #{tpu_custom_call.1} parent=55 // pred_region
          %p334 = scmp.lt.s32.totalorder %s20, 3
          %s335 = scalar_select %p334, %s20, 3
          %s336 = smul.addr %s335, 8
          %s337 = scalar_lea.vmem %s0, %s336
        $region60: #{tpu_custom_call.1} parent=55 // pred_fallthru
          _
      $region56: #{tpu_custom_call.1} parent=5 // pred_fallthru
        _
      %p338 = scmp.le.s32.totalorder 1, %s20
      %p339 = scmp.lt.s32.totalorder %s20, 5
      %p340 = pnand %p338, %p339
      %p341 = pneg %p340
      // Predicated region
      $region61: #{tpu_custom_call.1} parent=5 // pred_check
        _
      $region62: #{tpu_custom_call.1} parent=5 // pred_check_branch
        %343 = sbr.rel (%p340) target = $region64
      $region63: #{tpu_custom_call.1} parent=5 // pred_region
        %s344 = ssub.s32 %s20, 1
        %p345 = scmp.lt.s32.totalorder %s25, 3
        %s346 = scalar_select %p345, %s25, 3
        %s347 = smul.addr %s346, 8
        %s348 = scalar_lea.vmem %s0, %s347
        %p349 = pneg %p46
        %p350 = pneg %p43
        %p351 = pneg %p67
        %p352 = pneg %p64
        %p353 = pneg %p88
        %p354 = pneg %p85
        %p355 = pneg %p109
        %p356 = pneg %p106
        %p357 = pneg %p130
        %p358 = pneg %p127
        %p359 = pneg %p151
        %p360 = pneg %p148
        %p361 = pneg %p172
        %p362 = pneg %p169
        %p363 = pneg %p193
        %p364 = pneg %p190
        %p365 = pneg %p214
        %p366 = pneg %p211
        %p367 = pneg %p235
        %p368 = pneg %p232
        %p369 = pneg %p256
        %p370 = pneg %p253
        %p371 = pneg %p282
        %p372 = pneg %p279
        %s373 = sand.u32 %s269, 1
        %s374 = scalar_lea.sflag [#allocation3], %s373
        %s375 = sand.u32 %s269, 1
        %s376 = smul.addr %s375, 8
        %s377 = scalar_lea.vmem [#allocation2], %s376
        %p378 = scmp.lt.s32.totalorder %s25, 3
        %s379 = scalar_select %p378, %s25, 3
        %s380 = smul.addr %s379, 8
        %s381 = scalar_lea.vmem %s0, %s380
        %v382 = vld [vmem:[%s381] sm:$0xff]
        %v383 = vld [vmem:[%s1] sm:$0xff]
        %v384 = vld [vmem:[%s1 + $0x8] sm:$0xff]
        %v385 = vld [vmem:[%s1 + $0x10] sm:$0xff]
        %v386 = vld [vmem:[%s1 + $0x18] sm:$0xff]
        %v387 = vld [vmem:[%s1 + $0x20] sm:$0xff]
        %v388 = vld [vmem:[%s1 + $0x28] sm:$0xff]
        %v389 = vld [vmem:[%s1 + $0x30] sm:$0xff]
        %v390 = vld [vmem:[%s1 + $0x38] sm:$0xff]
        %v391 = vld [vmem:[%s2] sm:$0x1]
        %v393 = vlaneseq
        %v394 = vshrl.u32 %v393, 7
        %v395 = vsub.s32 0, %v394
        %v396 = vrot.slane %v391, %v395
        %vm398 = vcmask 523264
        %v400 = vsel %vm398, %v382, 0
        %402 = vmatprep.subr.mxu0 0.0
        %403 = vmatpush1.msra.mxu0 0.0
        %404 = vmatprep.subr.mxu0 0.0
        %405 = vmatpush1.msra.mxu0 0.0
        %406 = vmatprep.subr.mxu0 0.0
        %407 = vmatpush1.msra.mxu0 0.0
        %408 = vmatprep.subr.mxu0 0.0
        %409 = vmatpush1.msra.mxu0 0.0
        %410 = vmatprep.subr.mxu0 0.0
        %411 = vmatpush1.msra.mxu0 0.0
        %412 = vmatprep.subr.mxu0 0.0
        %413 = vmatpush1.msra.mxu0 0.0
        %414 = vmatprep.subr.mxu0 0.0
        %415 = vmatpush1.msra.mxu0 0.0
        %416 = vmatprep.subr.mxu0 0.0
        %417 = vmatpush1.msra.mxu0 0.0
        %418 = vmatprep.subr.mxu0 0.0
        %419 = vmatpush1.msra.mxu0 %v390
        %420 = vmatprep.subr.mxu0 0.0
        %421 = vmatpush1.msra.mxu0 %v389
        %422 = vmatprep.subr.mxu0 0.0
        %423 = vmatpush1.msra.mxu0 %v388
        %424 = vmatprep.subr.mxu0 0.0
        %425 = vmatpush1.msra.mxu0 %v387
        %426 = vmatprep.subr.mxu0 0.0
        %427 = vmatpush1.msra.mxu0 %v386
        %428 = vmatprep.subr.mxu0 0.0
        %429 = vmatpush1.msra.mxu0 %v385
        %430 = vmatprep.subr.mxu0 0.0
        %431 = vmatpush1.msra.mxu0 %v384
        %432 = vmatprep.subr.mxu0 0.0
        %433 = vmatpush1.msra.mxu0 %v383
        %434 = vmatprep.subr.mxu0 0.0
        %435 = vmatpush2.msra.mxu0 0.0
        %436 = vmatprep.subr.mxu0 0.0
        %437 = vmatpush2.msra.mxu0 0.0
        %438 = vmatprep.subr.mxu0 0.0
        %439 = vmatpush2.msra.mxu0 0.0
        %440 = vmatprep.subr.mxu0 0.0
        %441 = vmatpush2.msra.mxu0 0.0
        %442 = vmatprep.subr.mxu0 0.0
        %443 = vmatpush2.msra.mxu0 0.0
        %444 = vmatprep.subr.mxu0 0.0
        %445 = vmatpush2.msra.mxu0 0.0
        %446 = vmatprep.subr.mxu0 0.0
        %447 = vmatpush2.msra.mxu0 0.0
        %448 = vmatprep.subr.mxu0 0.0
        %449 = vmatpush2.msra.mxu0 0.0
        %450 = vmatprep.subr.mxu0 0.0
        %451 = vmatpush2.msra.mxu0 0.0
        %452 = vmatprep.subr.mxu0 0.0
        %453 = vmatpush2.msra.mxu0 0.0
        %454 = vmatprep.subr.mxu0 0.0
        %455 = vmatpush2.msra.mxu0 0.0
        %456 = vmatprep.subr.mxu0 0.0
        %457 = vmatpush2.msra.mxu0 0.0
        %458 = vmatprep.subr.mxu0 0.0
        %459 = vmatpush2.msra.mxu0 0.0
        %460 = vmatprep.subr.mxu0 0.0
        %461 = vmatpush2.msra.mxu0 0.0
        %462 = vmatprep.subr.mxu0 0.0
        %463 = vmatpush2.msra.mxu0 0.0
        %464 = vmatprep.subr.mxu0 0.0
        %465 = vmatpush2.msra.mxu0 0.0
        %466 = vmatprep.mubr.f32.mxu0 0.0
        %467 = vmatmul.mubr.f32.gmra.mxu0 %v400
        %v468 = vpop.f32.mrf.mxu0
        %v469 = vadd.f32 %v396, %v468
        %v470 = vpop.f32.mrf.mxu0
        %471 = vdwg.mxu0
        %v472 = vmax.f32 %v469, 0.0
        %v473 = vld [vmem:[%s3] sm:$0xff]
        %v474 = vld [vmem:[%s3 + $0x8] sm:$0xff]
        %v475 = vld [vmem:[%s3 + $0x10] sm:$0xff]
        %v476 = vld [vmem:[%s3 + $0x18] sm:$0xff]
        %v477 = vld [vmem:[%s4] sm:$0x1]
        %v479 = vlaneseq
        %v480 = vshrl.u32 %v479, 7
        %v481 = vsub.s32 0, %v480
        %v482 = vrot.slane %v477, %v481
        %vm484 = vcmask 261120
        %v486 = vsel %vm484, %v472, 0
        %488 = vmatprep.subr.mxu0 0.0
        %489 = vmatpush1.msra.mxu0 0.0
        %490 = vmatprep.subr.mxu0 0.0
        %491 = vmatpush1.msra.mxu0 0.0
        %492 = vmatprep.subr.mxu0 0.0
        %493 = vmatpush1.msra.mxu0 0.0
        %494 = vmatprep.subr.mxu0 0.0
        %495 = vmatpush1.msra.mxu0 0.0
        %496 = vmatprep.subr.mxu0 0.0
        %497 = vmatpush1.msra.mxu0 0.0
        %498 = vmatprep.subr.mxu0 0.0
        %499 = vmatpush1.msra.mxu0 0.0
        %500 = vmatprep.subr.mxu0 0.0
        %501 = vmatpush1.msra.mxu0 0.0
        %502 = vmatprep.subr.mxu0 0.0
        %503 = vmatpush1.msra.mxu0 0.0
        %504 = vmatprep.subr.mxu0 0.0
        %505 = vmatpush1.msra.mxu0 0.0
        %506 = vmatprep.subr.mxu0 0.0
        %507 = vmatpush1.msra.mxu0 0.0
        %508 = vmatprep.subr.mxu0 0.0
        %509 = vmatpush1.msra.mxu0 0.0
        %510 = vmatprep.subr.mxu0 0.0
        %511 = vmatpush1.msra.mxu0 0.0
        %512 = vmatprep.subr.mxu0 0.0
        %513 = vmatpush1.msra.mxu0 %v476
        %514 = vmatprep.subr.mxu0 0.0
        %515 = vmatpush1.msra.mxu0 %v475
        %516 = vmatprep.subr.mxu0 0.0
        %517 = vmatpush1.msra.mxu0 %v474
        %518 = vmatprep.subr.mxu0 0.0
        %519 = vmatpush1.msra.mxu0 %v473
        %520 = vmatprep.subr.mxu0 0.0
        %521 = vmatpush2.msra.mxu0 0.0
        %522 = vmatprep.subr.mxu0 0.0
        %523 = vmatpush2.msra.mxu0 0.0
        %524 = vmatprep.subr.mxu0 0.0
        %525 = vmatpush2.msra.mxu0 0.0
        %526 = vmatprep.subr.mxu0 0.0
        %527 = vmatpush2.msra.mxu0 0.0
        %528 = vmatprep.subr.mxu0 0.0
        %529 = vmatpush2.msra.mxu0 0.0
        %530 = vmatprep.subr.mxu0 0.0
        %531 = vmatpush2.msra.mxu0 0.0
        %532 = vmatprep.subr.mxu0 0.0
        %533 = vmatpush2.msra.mxu0 0.0
        %534 = vmatprep.subr.mxu0 0.0
        %535 = vmatpush2.msra.mxu0 0.0
        %536 = vmatprep.subr.mxu0 0.0
        %537 = vmatpush2.msra.mxu0 0.0
        %538 = vmatprep.subr.mxu0 0.0
        %539 = vmatpush2.msra.mxu0 0.0
        %540 = vmatprep.subr.mxu0 0.0
        %541 = vmatpush2.msra.mxu0 0.0
        %542 = vmatprep.subr.mxu0 0.0
        %543 = vmatpush2.msra.mxu0 0.0
        %544 = vmatprep.subr.mxu0 0.0
        %545 = vmatpush2.msra.mxu0 0.0
        %546 = vmatprep.subr.mxu0 0.0
        %547 = vmatpush2.msra.mxu0 0.0
        %548 = vmatprep.subr.mxu0 0.0
        %549 = vmatpush2.msra.mxu0 0.0
        %550 = vmatprep.subr.mxu0 0.0
        %551 = vmatpush2.msra.mxu0 0.0
        %552 = vmatprep.mubr.f32.mxu0 0.0
        %553 = vmatmul.mubr.f32.gmra.mxu0 %v486
        %v554 = vpop.f32.mrf.mxu0
        %v555 = vadd.f32 %v482, %v554
        %v556 = vpop.f32.mrf.mxu0
        %557 = vdwg.mxu0
        %v558 = vmax.f32 %v555, 0.0
        %v559 = vld [vmem:[%s5] sm:$0xff]
        %v560 = vld [vmem:[%s5 + $0x8] sm:$0xff]
        %v561 = vld [vmem:[%s6] sm:$0x1]
        %v563 = vlaneseq
        %v564 = vshrl.u32 %v563, 7
        %v565 = vsub.s32 0, %v564
        %v566 = vrot.slane %v561, %v565
        %vm568 = vcmask 130048
        %v570 = vsel %vm568, %v558, 0
        %572 = vmatprep.subr.mxu0 0.0
        %573 = vmatpush1.msra.mxu0 0.0
        %574 = vmatprep.subr.mxu0 0.0
        %575 = vmatpush1.msra.mxu0 0.0
        %576 = vmatprep.subr.mxu0 0.0
        %577 = vmatpush1.msra.mxu0 0.0
        %578 = vmatprep.subr.mxu0 0.0
        %579 = vmatpush1.msra.mxu0 0.0
        %580 = vmatprep.subr.mxu0 0.0
        %581 = vmatpush1.msra.mxu0 0.0
        %582 = vmatprep.subr.mxu0 0.0
        %583 = vmatpush1.msra.mxu0 0.0
        %584 = vmatprep.subr.mxu0 0.0
        %585 = vmatpush1.msra.mxu0 0.0
        %586 = vmatprep.subr.mxu0 0.0
        %587 = vmatpush1.msra.mxu0 0.0
        %588 = vmatprep.subr.mxu0 0.0
        %589 = vmatpush1.msra.mxu0 0.0
        %590 = vmatprep.subr.mxu0 0.0
        %591 = vmatpush1.msra.mxu0 0.0
        %592 = vmatprep.subr.mxu0 0.0
        %593 = vmatpush1.msra.mxu0 0.0
        %594 = vmatprep.subr.mxu0 0.0
        %595 = vmatpush1.msra.mxu0 0.0
        %596 = vmatprep.subr.mxu0 0.0
        %597 = vmatpush1.msra.mxu0 0.0
        %598 = vmatprep.subr.mxu0 0.0
        %599 = vmatpush1.msra.mxu0 0.0
        %600 = vmatprep.subr.mxu0 0.0
        %601 = vmatpush1.msra.mxu0 %v560
        %602 = vmatprep.subr.mxu0 0.0
        %603 = vmatpush1.msra.mxu0 %v559
        %604 = vmatprep.subr.mxu0 0.0
        %605 = vmatpush2.msra.mxu0 0.0
        %606 = vmatprep.subr.mxu0 0.0
        %607 = vmatpush2.msra.mxu0 0.0
        %608 = vmatprep.subr.mxu0 0.0
        %609 = vmatpush2.msra.mxu0 0.0
        %610 = vmatprep.subr.mxu0 0.0
        %611 = vmatpush2.msra.mxu0 0.0
        %612 = vmatprep.subr.mxu0 0.0
        %613 = vmatpush2.msra.mxu0 0.0
        %614 = vmatprep.subr.mxu0 0.0
        %615 = vmatpush2.msra.mxu0 0.0
        %616 = vmatprep.subr.mxu0 0.0
        %617 = vmatpush2.msra.mxu0 0.0
        %618 = vmatprep.subr.mxu0 0.0
        %619 = vmatpush2.msra.mxu0 0.0
        %620 = vmatprep.subr.mxu0 0.0
        %621 = vmatpush2.msra.mxu0 0.0
        %622 = vmatprep.subr.mxu0 0.0
        %623 = vmatpush2.msra.mxu0 0.0
        %624 = vmatprep.subr.mxu0 0.0
        %625 = vmatpush2.msra.mxu0 0.0
        %626 = vmatprep.subr.mxu0 0.0
        %627 = vmatpush2.msra.mxu0 0.0
        %628 = vmatprep.subr.mxu0 0.0
        %629 = vmatpush2.msra.mxu0 0.0
        %630 = vmatprep.subr.mxu0 0.0
        %631 = vmatpush2.msra.mxu0 0.0
        %632 = vmatprep.subr.mxu0 0.0
        %633 = vmatpush2.msra.mxu0 0.0
        %634 = vmatprep.subr.mxu0 0.0
        %635 = vmatpush2.msra.mxu0 0.0
        %636 = vmatprep.mubr.f32.mxu0 0.0
        %637 = vmatmul.mubr.f32.gmra.mxu0 %v570
        %v638 = vpop.f32.mrf.mxu0
        %v639 = vadd.f32 %v566, %v638
        %v640 = vpop.f32.mrf.mxu0
        %641 = vdwg.mxu0
        %v642 = vmax.f32 %v639, 0.0
        %v643 = vld [vmem:[%s7] sm:$0xff]
        %v644 = vld [vmem:[%s7 + $0x8] sm:$0xff]
        %v645 = vld [vmem:[%s8] sm:$0x1]
        %v647 = vlaneseq
        %v648 = vshrl.u32 %v647, 7
        %v649 = vsub.s32 0, %v648
        %v650 = vrot.slane %v645, %v649
        %v653 = vsel %vm568, %v642, 0
        %655 = vmatprep.subr.mxu0 0.0
        %656 = vmatpush1.msra.mxu0 0.0
        %657 = vmatprep.subr.mxu0 0.0
        %658 = vmatpush1.msra.mxu0 0.0
        %659 = vmatprep.subr.mxu0 0.0
        %660 = vmatpush1.msra.mxu0 0.0
        %661 = vmatprep.subr.mxu0 0.0
        %662 = vmatpush1.msra.mxu0 0.0
        %663 = vmatprep.subr.mxu0 0.0
        %664 = vmatpush1.msra.mxu0 0.0
        %665 = vmatprep.subr.mxu0 0.0
        %666 = vmatpush1.msra.mxu0 0.0
        %667 = vmatprep.subr.mxu0 0.0
        %668 = vmatpush1.msra.mxu0 0.0
        %669 = vmatprep.subr.mxu0 0.0
        %670 = vmatpush1.msra.mxu0 0.0
        %671 = vmatprep.subr.mxu0 0.0
        %672 = vmatpush1.msra.mxu0 0.0
        %673 = vmatprep.subr.mxu0 0.0
        %674 = vmatpush1.msra.mxu0 0.0
        %675 = vmatprep.subr.mxu0 0.0
        %676 = vmatpush1.msra.mxu0 0.0
        %677 = vmatprep.subr.mxu0 0.0
        %678 = vmatpush1.msra.mxu0 0.0
        %679 = vmatprep.subr.mxu0 0.0
        %680 = vmatpush1.msra.mxu0 0.0
        %681 = vmatprep.subr.mxu0 0.0
        %682 = vmatpush1.msra.mxu0 0.0
        %683 = vmatprep.subr.mxu0 0.0
        %684 = vmatpush1.msra.mxu0 %v644
        %685 = vmatprep.subr.mxu0 0.0
        %686 = vmatpush1.msra.mxu0 %v643
        %687 = vmatprep.subr.mxu0 0.0
        %688 = vmatpush2.msra.mxu0 0.0
        %689 = vmatprep.subr.mxu0 0.0
        %690 = vmatpush2.msra.mxu0 0.0
        %691 = vmatprep.subr.mxu0 0.0
        %692 = vmatpush2.msra.mxu0 0.0
        %693 = vmatprep.subr.mxu0 0.0
        %694 = vmatpush2.msra.mxu0 0.0
        %695 = vmatprep.subr.mxu0 0.0
        %696 = vmatpush2.msra.mxu0 0.0
        %697 = vmatprep.subr.mxu0 0.0
        %698 = vmatpush2.msra.mxu0 0.0
        %699 = vmatprep.subr.mxu0 0.0
        %700 = vmatpush2.msra.mxu0 0.0
        %701 = vmatprep.subr.mxu0 0.0
        %702 = vmatpush2.msra.mxu0 0.0
        %703 = vmatprep.subr.mxu0 0.0
        %704 = vmatpush2.msra.mxu0 0.0
        %705 = vmatprep.subr.mxu0 0.0
        %706 = vmatpush2.msra.mxu0 0.0
        %707 = vmatprep.subr.mxu0 0.0
        %708 = vmatpush2.msra.mxu0 0.0
        %709 = vmatprep.subr.mxu0 0.0
        %710 = vmatpush2.msra.mxu0 0.0
        %711 = vmatprep.subr.mxu0 0.0
        %712 = vmatpush2.msra.mxu0 0.0
        %713 = vmatprep.subr.mxu0 0.0
        %714 = vmatpush2.msra.mxu0 0.0
        %715 = vmatprep.subr.mxu0 0.0
        %716 = vmatpush2.msra.mxu0 0.0
        %717 = vmatprep.subr.mxu0 0.0
        %718 = vmatpush2.msra.mxu0 0.0
        %719 = vmatprep.mubr.f32.mxu0 0.0
        %720 = vmatmul.mubr.f32.gmra.mxu0 %v653
        %v721 = vpop.f32.mrf.mxu0
        %v722 = vadd.f32 %v650, %v721
        %v723 = vpop.f32.mrf.mxu0
        %724 = vdwg.mxu0
        %v725 = vmax.f32 %v722, 0.0
        %v726 = vld [vmem:[%s9] sm:$0xff]
        %v727 = vld [vmem:[%s9 + $0x8] sm:$0xff]
        %v728 = vld [vmem:[%s9 + $0x10] sm:$0xff]
        %v729 = vld [vmem:[%s9 + $0x18] sm:$0xff]
        %v730 = vld [vmem:[%s10] sm:$0x1]
        %v732 = vlaneseq
        %v733 = vshrl.u32 %v732, 7
        %v734 = vsub.s32 0, %v733
        %v735 = vrot.slane %v730, %v734
        %v738 = vsel %vm484, %v725, 0
        %740 = vmatprep.subr.mxu0 0.0
        %741 = vmatpush1.msra.mxu0 0.0
        %742 = vmatprep.subr.mxu0 0.0
        %743 = vmatpush1.msra.mxu0 0.0
        %744 = vmatprep.subr.mxu0 0.0
        %745 = vmatpush1.msra.mxu0 0.0
        %746 = vmatprep.subr.mxu0 0.0
        %747 = vmatpush1.msra.mxu0 0.0
        %748 = vmatprep.subr.mxu0 0.0
        %749 = vmatpush1.msra.mxu0 0.0
        %750 = vmatprep.subr.mxu0 0.0
        %751 = vmatpush1.msra.mxu0 0.0
        %752 = vmatprep.subr.mxu0 0.0
        %753 = vmatpush1.msra.mxu0 0.0
        %754 = vmatprep.subr.mxu0 0.0
        %755 = vmatpush1.msra.mxu0 0.0
        %756 = vmatprep.subr.mxu0 0.0
        %757 = vmatpush1.msra.mxu0 0.0
        %758 = vmatprep.subr.mxu0 0.0
        %759 = vmatpush1.msra.mxu0 0.0
        %760 = vmatprep.subr.mxu0 0.0
        %761 = vmatpush1.msra.mxu0 0.0
        %762 = vmatprep.subr.mxu0 0.0
        %763 = vmatpush1.msra.mxu0 0.0
        %764 = vmatprep.subr.mxu0 0.0
        %765 = vmatpush1.msra.mxu0 %v729
        %766 = vmatprep.subr.mxu0 0.0
        %767 = vmatpush1.msra.mxu0 %v728
        %768 = vmatprep.subr.mxu0 0.0
        %769 = vmatpush1.msra.mxu0 %v727
        %770 = vmatprep.subr.mxu0 0.0
        %771 = vmatpush1.msra.mxu0 %v726
        %772 = vmatprep.subr.mxu0 0.0
        %773 = vmatpush2.msra.mxu0 0.0
        %774 = vmatprep.subr.mxu0 0.0
        %775 = vmatpush2.msra.mxu0 0.0
        %776 = vmatprep.subr.mxu0 0.0
        %777 = vmatpush2.msra.mxu0 0.0
        %778 = vmatprep.subr.mxu0 0.0
        %779 = vmatpush2.msra.mxu0 0.0
        %780 = vmatprep.subr.mxu0 0.0
        %781 = vmatpush2.msra.mxu0 0.0
        %782 = vmatprep.subr.mxu0 0.0
        %783 = vmatpush2.msra.mxu0 0.0
        %784 = vmatprep.subr.mxu0 0.0
        %785 = vmatpush2.msra.mxu0 0.0
        %786 = vmatprep.subr.mxu0 0.0
        %787 = vmatpush2.msra.mxu0 0.0
        %788 = vmatprep.subr.mxu0 0.0
        %789 = vmatpush2.msra.mxu0 0.0
        %790 = vmatprep.subr.mxu0 0.0
        %791 = vmatpush2.msra.mxu0 0.0
        %792 = vmatprep.subr.mxu0 0.0
        %793 = vmatpush2.msra.mxu0 0.0
        %794 = vmatprep.subr.mxu0 0.0
        %795 = vmatpush2.msra.mxu0 0.0
        %796 = vmatprep.subr.mxu0 0.0
        %797 = vmatpush2.msra.mxu0 0.0
        %798 = vmatprep.subr.mxu0 0.0
        %799 = vmatpush2.msra.mxu0 0.0
        %800 = vmatprep.subr.mxu0 0.0
        %801 = vmatpush2.msra.mxu0 0.0
        %802 = vmatprep.subr.mxu0 0.0
        %803 = vmatpush2.msra.mxu0 0.0
        %804 = vmatprep.mubr.f32.mxu0 0.0
        %805 = vmatmul.mubr.f32.gmra.mxu0 %v738
        %v806 = vpop.f32.mrf.mxu0
        %v807 = vadd.f32 %v735, %v806
        %v808 = vpop.f32.mrf.mxu0
        %809 = vdwg.mxu0
        %810 = vst.msk [vmem:[%s377] sm:$0xff] %vm398, %v807
        %s811 = sand.u32 %s269, 1
        %s812 = scalar_lea.sflag [#allocation3], %s811
        %s813 = sand.u32 %s269, 1
        %s814 = smul.addr %s813, 8
        %s815 = scalar_lea.vmem [#allocation2], %s814
        // Predicated region
        $region65: #{tpu_custom_call.1} parent=63 // pred_check
          %p816 = pneg %p279
        $region66: #{tpu_custom_call.1} parent=63 // pred_check_branch
          %818 = sbr.rel (%p816) target = $region68
        $region67: #{tpu_custom_call.1} parent=63 // pred_region
          %s820 = ssub.s32 128, 128
          %821 = vsyncadd %s812, %s820
          %s822 = smul.addr %s25, 128
          %s823 = scalar_lea.hbm %s11, %s822
          %s825 = sshll.u32 %s815, 4
          %s826 = int_to_ptr.vmem [resolvable:$true] %s825
          %828 = dma.vmem_to_hbm [thread:$0]  %s826, 128, %s823, %s812
        $region68: #{tpu_custom_call.1} parent=63 // pred_fallthru
          _
      $region64: #{tpu_custom_call.1} parent=5 // pred_fallthru
        _
      %p829 = scmp.le.s32.totalorder 2, %s20
      // Predicated region
      $region69: #{tpu_custom_call.1} parent=5 // pred_check
        %p830 = pneg %p829
      $region70: #{tpu_custom_call.1} parent=5 // pred_check_branch
        %832 = sbr.rel (%p830) target = $region72
      $region71: #{tpu_custom_call.1} parent=5 // pred_region
        %s833 = ssub.s32 %s20, 2
        // Predicated region
        $region73: #{tpu_custom_call.1} parent=71 // pred_check
          %p834 = pneg %p285
        $region74: #{tpu_custom_call.1} parent=71 // pred_check_branch
          %836 = sbr.rel (%p834) target = $region76
        $region75: #{tpu_custom_call.1} parent=71 // pred_region
          %s837 = sand.u32 %s270, 1
          %s838 = scalar_lea.sflag [#allocation3], %s837
          %s839 = sand.u32 %s270, 1
          %s840 = smul.addr %s839, 8
          %s841 = scalar_lea.vmem [#allocation2], %s840
          %842 = dma.done %s838, 128
        $region76: #{tpu_custom_call.1} parent=71 // pred_fallthru
          _
      $region72: #{tpu_custom_call.1} parent=5 // pred_fallthru
        _
    $region6: #{tpu_custom_call.1} parent=1 // loop_footer
      %s24 = sadd.s32 1, %s20
    $region7: #{tpu_custom_call.1} parent=1 // loop_footer_branch
      %19 = sbr.rel target = $region3
    $region8: #{tpu_custom_call.1} parent=1 // loop_exit
      _
    %843 = vsyncpa [#allocation3], 1
    %s844 = scalar_lea.sflag [#allocation3], 1
    %845 = vsyncpa %s844, 1

</llo_original>
